<compile_context>
chip_gen: v5e
topology: v5e:2x2
jax: 0.10.0
libtpu: 0.0.40
codegen_flags: <defaults>
</compile_context>

<pallas_src>
import math
import numpy as np
import jax
import jax.numpy as jnp
from jax.experimental import pallas as pl
from jax.experimental.pallas import tpu as pltpu

# ---- model config (small shapes consistent with the module) ----
INPUT_DIM = 32
EMBED_DIM = 32
NUM_HEADS = 4
HEAD_DIM  = EMBED_DIM // NUM_HEADS          # 8
BATCH     = 2
SEQ_LEN   = 8

SM_SCALE = 1.0 / math.sqrt(HEAD_DIM)


# --------------------------------------------------------------------------
# Kernel
# --------------------------------------------------------------------------
def mha_kernel(x_ref, wq_ref, wk_ref, wv_ref, bq_ref, bk_ref, bv_ref,
               wo_ref, bo_ref, o_ref):
    x = x_ref[0]                                              # [S, INPUT_DIM]

    # Lane-dense QKV projections on the MXU (weights pre-packed head-major).
    q = jnp.dot(x, wq_ref[...], preferred_element_type=jnp.float32) + bq_ref[...]
    k = jnp.dot(x, wk_ref[...], preferred_element_type=jnp.float32) + bk_ref[...]
    v = jnp.dot(x, wv_ref[...], preferred_element_type=jnp.float32) + bv_ref[...]

    wo = wo_ref[...]                                          # hoist [E, E] once
    seq = x.shape[0]
    acc = jnp.zeros((seq, EMBED_DIM), jnp.float32)

    # Static unroll over heads; o_proj folded into the loop as a block-sum so the
    # per-head outputs never need to be concatenated in-kernel.
    for h in range(NUM_HEADS):
        lo = h * HEAD_DIM
        hi = lo + HEAD_DIM
        qh = q[:, lo:hi]                                      # [S, hd]
        kh = k[:, lo:hi]
        vh = v[:, lo:hi]

        logits = jnp.einsum('qd,kd->qk', qh, kh,
                            preferred_element_type=jnp.float32) * SM_SCALE
        m = jnp.max(logits, axis=-1, keepdims=True)
        p = jnp.exp(logits - m)
        attn = p / jnp.sum(p, axis=-1, keepdims=True)         # [S, S]

        oh = jnp.dot(attn, vh, preferred_element_type=jnp.float32)       # [S, hd]
        acc = acc + jnp.dot(oh, wo[lo:hi, :],
                            preferred_element_type=jnp.float32)          # [S, E]

    o_ref[0] = (acc + bo_ref[...]).astype(o_ref.dtype)


# --------------------------------------------------------------------------
# Wrapper
# --------------------------------------------------------------------------
def _replicated_spec(p):
    nd = p.ndim
    return pl.BlockSpec(p.shape, lambda i, _nd=nd: (0,) * _nd)


def mha_forward(x, wq, wk, wv, bq, bk, bv, wo, bo):
    B, S, D = x.shape
    in_specs = [pl.BlockSpec((1, S, D), lambda i: (i, 0, 0))]
    in_specs += [_replicated_spec(p) for p in (wq, wk, wv, bq, bk, bv, wo, bo)]
    out_specs = pl.BlockSpec((1, S, EMBED_DIM), lambda i: (i, 0, 0))
    return pl.pallas_call(
        mha_kernel,
        out_shape=jax.ShapeDtypeStruct((B, S, EMBED_DIM), jnp.float32),
        grid=(B,),
        in_specs=in_specs,
        out_specs=out_specs,
        compiler_params=pltpu.CompilerParams(dimension_semantics=("parallel",)),
    )(x, wq, wk, wv, bq, bk, bv, wo, bo)


# --------------------------------------------------------------------------
# Parameter init (torch layout) and conversion to kernel layout
# --------------------------------------------------------------------------
def init_torch_params(key):
    """Returns torch-layout params: qkv W [3E, D], qkv b [3E], o W [E, E], o b [E]."""
    k1, k2, k3, k4 = jax.random.split(key, 4)
    lim_qkv = math.sqrt(6.0 / (INPUT_DIM + 3 * EMBED_DIM))    # xavier_uniform
    w_qkv = jax.random.uniform(k1, (3 * EMBED_DIM, INPUT_DIM), jnp.float32,
                               -lim_qkv, lim_qkv)
    lim_o = math.sqrt(6.0 / (EMBED_DIM + EMBED_DIM))
    w_o = jax.random.uniform(k3, (EMBED_DIM, EMBED_DIM), jnp.float32, -lim_o, lim_o)
    # (module zero-inits biases; use small random biases here so the bias-add path
    #  is actually exercised by the numerics check — forward semantics unchanged)
    b_qkv = jax.random.uniform(k2, (3 * EMBED_DIM,), jnp.float32, -0.1, 0.1)
    b_o = jax.random.uniform(k4, (EMBED_DIM,), jnp.float32, -0.1, 0.1)
    return w_qkv, b_qkv, w_o, b_o


def convert_params(w_qkv_t, b_qkv_t, w_o_t, b_o_t):
    """torch interleaved [q_h|k_h|v_h] rows -> head-major Wq/Wk/Wv in [in, out] layout."""
    H, hd, D, E = NUM_HEADS, HEAD_DIM, INPUT_DIM, EMBED_DIM
    w4 = w_qkv_t.reshape(H, 3, hd, D)                          # [H, qkv, hd, D]
    b4 = b_qkv_t.reshape(H, 3, hd)
    wq = w4[:, 0].reshape(E, D).T                              # [D, E] head-major cols
    wk = w4[:, 1].reshape(E, D).T
    wv = w4[:, 2].reshape(E, D).T
    bq = b4[:, 0].reshape(1, E)
    bk = b4[:, 1].reshape(1, E)
    bv = b4[:, 2].reshape(1, E)
    wo = w_o_t.T                                               # [E, E] (in, out)
    bo = b_o_t.reshape(1, E)
    return wq, wk, wv, bq, bk, bv, wo, bo


# --------------------------------------------------------------------------
# Pure-JAX reference mirroring the torch forward exactly
# --------------------------------------------------------------------------
def reference_forward(x, w_qkv_t, b_qkv_t, w_o_t, b_o_t):
    P = jax.lax.Precision.HIGHEST
    B, S, _ = x.shape
    qkv = jnp.einsum('bsd,ed->bse', x, w_qkv_t, precision=P) + b_qkv_t
    qkv = qkv.reshape(B, S, NUM_HEADS, 3 * HEAD_DIM).transpose(0, 2, 1, 3)
    q = qkv[..., :HEAD_DIM]
    k = qkv[..., HEAD_DIM:2 * HEAD_DIM]
    v = qkv[..., 2 * HEAD_DIM:]
    logits = jnp.einsum('bhqd,bhkd->bhqk', q, k, precision=P) / math.sqrt(HEAD_DIM)
    attn = jax.nn.softmax(logits, axis=-1)
    vals = jnp.einsum('bhqk,bhkd->bhqd', attn, v, precision=P)
    vals = vals.transpose(0, 2, 1, 3).reshape(B, S, EMBED_DIM)
    return jnp.einsum('bse,fe->bsf', vals, w_o_t, precision=P) + b_o_t


# --------------------------------------------------------------------------
if __name__ == "__main__":
    key = jax.random.PRNGKey(0)
    kp, kx = jax.random.split(key)
    torch_params = init_torch_params(kp)
    kern_params = convert_params(*torch_params)

    x = jax.random.normal(kx, (BATCH, SEQ_LEN, INPUT_DIM), jnp.float32)

    out = jax.block_until_ready(mha_forward(x, *kern_params))

    ref = reference_forward(x, *torch_params)
    np.testing.assert_allclose(np.asarray(out), np.asarray(ref), rtol=1e-4, atol=1e-4)

    # TODO(synk): optional attention mask and return_attention=True are not wired up
    # (the default forward path mask=None, return_attention=False is implemented).
    print("KERNEL_OK")
</pallas_src>

<mosaic_0001>
module attributes {stable_mosaic.version = 11 : i64} {
  func.func @mha_kernel(%arg0: i32, %arg1: memref<1x8x32xf32, #tpu.memory_space<vmem>>, %arg2: memref<32x32xf32, #tpu.memory_space<vmem>>, %arg3: memref<32x32xf32, #tpu.memory_space<vmem>>, %arg4: memref<32x32xf32, #tpu.memory_space<vmem>>, %arg5: memref<1x32xf32, #tpu.memory_space<vmem>>, %arg6: memref<1x32xf32, #tpu.memory_space<vmem>>, %arg7: memref<1x32xf32, #tpu.memory_space<vmem>>, %arg8: memref<32x32xf32, #tpu.memory_space<vmem>>, %arg9: memref<1x32xf32, #tpu.memory_space<vmem>>, %arg10: memref<1x8x32xf32, #tpu.memory_space<vmem>>) attributes {dimension_semantics = [#tpu.dimension_semantics<parallel>], iteration_bounds = array<i64: 2>, scalar_prefetch = 0 : i64, scratch_operands = 0 : i64, tpu.core_type = #tpu.core_type<tc>, window_params = [{transform_indices = @transform_0, window_bounds = array<i64: 1, 8, 32>}, {pipeline_mode = #tpu.pipeline_mode<synchronous>, transform_indices = @transform_1, window_bounds = array<i64: 32, 32>}, {pipeline_mode = #tpu.pipeline_mode<synchronous>, transform_indices = @transform_2, window_bounds = array<i64: 32, 32>}, {pipeline_mode = #tpu.pipeline_mode<synchronous>, transform_indices = @transform_3, window_bounds = array<i64: 32, 32>}, {pipeline_mode = #tpu.pipeline_mode<synchronous>, transform_indices = @transform_4, window_bounds = array<i64: 1, 32>}, {pipeline_mode = #tpu.pipeline_mode<synchronous>, transform_indices = @transform_5, window_bounds = array<i64: 1, 32>}, {pipeline_mode = #tpu.pipeline_mode<synchronous>, transform_indices = @transform_6, window_bounds = array<i64: 1, 32>}, {pipeline_mode = #tpu.pipeline_mode<synchronous>, transform_indices = @transform_7, window_bounds = array<i64: 32, 32>}, {pipeline_mode = #tpu.pipeline_mode<synchronous>, transform_indices = @transform_8, window_bounds = array<i64: 1, 32>}, {transform_indices = @transform_9, window_bounds = array<i64: 1, 8, 32>}]} {
    %c0 = arith.constant 0 : index
    %c0_0 = arith.constant 0 : index
    %c0_1 = arith.constant 0 : index
    %0 = vector.load %arg1[%c0, %c0_0, %c0_1] : memref<1x8x32xf32, #tpu.memory_space<vmem>>, vector<1x8x32xf32>
    %1 = vector.shape_cast %0 : vector<1x8x32xf32> to vector<8x32xf32>
    %c0_2 = arith.constant 0 : index
    %c0_3 = arith.constant 0 : index
    %2 = vector.load %arg2[%c0_2, %c0_3] : memref<32x32xf32, #tpu.memory_space<vmem>>, vector<32x32xf32>
    %cst = arith.constant dense<0.000000e+00> : vector<8x32xf32>
    %3 = tpu.matmul %1, %2, %cst {dimension_numbers = #tpu.dot_dimension_numbers<[1], [0], [0], [1], [0, 0, 1, 1], [], []>} : vector<8x32xf32>, vector<32x32xf32>, vector<8x32xf32> -> vector<8x32xf32>
    %c0_4 = arith.constant 0 : index
    %c0_5 = arith.constant 0 : index
    %4 = vector.load %arg5[%c0_4, %c0_5] : memref<1x32xf32, #tpu.memory_space<vmem>>, vector<1x32xf32>
    %5 = vector.broadcast %4 : vector<1x32xf32> to vector<8x32xf32>
    %6 = arith.addf %3, %5 : vector<8x32xf32>
    %c0_6 = arith.constant 0 : index
    %c0_7 = arith.constant 0 : index
    %7 = vector.load %arg3[%c0_6, %c0_7] : memref<32x32xf32, #tpu.memory_space<vmem>>, vector<32x32xf32>
    %cst_8 = arith.constant dense<0.000000e+00> : vector<8x32xf32>
    %8 = tpu.matmul %1, %7, %cst_8 {dimension_numbers = #tpu.dot_dimension_numbers<[1], [0], [0], [1], [0, 0, 1, 1], [], []>} : vector<8x32xf32>, vector<32x32xf32>, vector<8x32xf32> -> vector<8x32xf32>
    %c0_9 = arith.constant 0 : index
    %c0_10 = arith.constant 0 : index
    %9 = vector.load %arg6[%c0_9, %c0_10] : memref<1x32xf32, #tpu.memory_space<vmem>>, vector<1x32xf32>
    %10 = vector.broadcast %9 : vector<1x32xf32> to vector<8x32xf32>
    %11 = arith.addf %8, %10 : vector<8x32xf32>
    %c0_11 = arith.constant 0 : index
    %c0_12 = arith.constant 0 : index
    %12 = vector.load %arg4[%c0_11, %c0_12] : memref<32x32xf32, #tpu.memory_space<vmem>>, vector<32x32xf32>
    %cst_13 = arith.constant dense<0.000000e+00> : vector<8x32xf32>
    %13 = tpu.matmul %1, %12, %cst_13 {dimension_numbers = #tpu.dot_dimension_numbers<[1], [0], [0], [1], [0, 0, 1, 1], [], []>} : vector<8x32xf32>, vector<32x32xf32>, vector<8x32xf32> -> vector<8x32xf32>
    %c0_14 = arith.constant 0 : index
    %c0_15 = arith.constant 0 : index
    %14 = vector.load %arg7[%c0_14, %c0_15] : memref<1x32xf32, #tpu.memory_space<vmem>>, vector<1x32xf32>
    %15 = vector.broadcast %14 : vector<1x32xf32> to vector<8x32xf32>
    %16 = arith.addf %13, %15 : vector<8x32xf32>
    %c0_16 = arith.constant 0 : index
    %c0_17 = arith.constant 0 : index
    %17 = vector.load %arg8[%c0_16, %c0_17] : memref<32x32xf32, #tpu.memory_space<vmem>>, vector<32x32xf32>
    %cst_18 = arith.constant 0.000000e+00 : f32
    %18 = vector.broadcast %cst_18 : f32 to vector<8x32xf32>
    %19 = vector.extract_strided_slice %6 {offsets = [0, 0], sizes = [8, 8], strides = [1, 1]} : vector<8x32xf32> to vector<8x8xf32>
    %20 = vector.extract_strided_slice %11 {offsets = [0, 0], sizes = [8, 8], strides = [1, 1]} : vector<8x32xf32> to vector<8x8xf32>
    %21 = vector.extract_strided_slice %16 {offsets = [0, 0], sizes = [8, 8], strides = [1, 1]} : vector<8x32xf32> to vector<8x8xf32>
    "tpu.trace_start"() <{level = 10 : i32, message = "qd,kd->qk"}> : () -> ()
    %cst_19 = arith.constant dense<0.000000e+00> : vector<8x8xf32>
    %22 = tpu.matmul %19, %20, %cst_19 {dimension_numbers = #tpu.dot_dimension_numbers<[1], [1], [0], [0], [0, 0, 1, 0], [], []>} : vector<8x8xf32>, vector<8x8xf32>, vector<8x8xf32> -> vector<8x8xf32>
    "tpu.trace_stop"() : () -> ()
    %cst_20 = arith.constant 0.353553385 : f32
    %23 = vector.broadcast %cst_20 : f32 to vector<8x8xf32>
    %24 = arith.mulf %22, %23 : vector<8x8xf32>
    %cst_21 = arith.constant dense<0xFF800000> : vector<8xf32>
    %25 = vector.multi_reduction <maximumf>, %24, %cst_21 [1] : vector<8x8xf32> to vector<8xf32>
    %26 = vector.shape_cast %25 : vector<8xf32> to vector<8x1xf32>
    %27 = vector.broadcast %26 : vector<8x1xf32> to vector<8x8xf32>
    %28 = arith.subf %24, %27 : vector<8x8xf32>
    %29 = math.exp %28 : vector<8x8xf32>
    %cst_22 = arith.constant dense<0.000000e+00> : vector<8xf32>
    %30 = vector.multi_reduction <add>, %29, %cst_22 [1] : vector<8x8xf32> to vector<8xf32>
    %31 = vector.shape_cast %30 : vector<8xf32> to vector<8x1xf32>
    %32 = vector.broadcast %31 : vector<8x1xf32> to vector<8x8xf32>
    %33 = arith.divf %29, %32 : vector<8x8xf32>
    %cst_23 = arith.constant dense<0.000000e+00> : vector<8x8xf32>
    %34 = tpu.matmul %33, %21, %cst_23 {dimension_numbers = #tpu.dot_dimension_numbers<[1], [0], [0], [1], [0, 0, 1, 1], [], []>} : vector<8x8xf32>, vector<8x8xf32>, vector<8x8xf32> -> vector<8x8xf32>
    %35 = vector.extract_strided_slice %17 {offsets = [0, 0], sizes = [8, 32], strides = [1, 1]} : vector<32x32xf32> to vector<8x32xf32>
    %cst_24 = arith.constant dense<0.000000e+00> : vector<8x32xf32>
    %36 = tpu.matmul %34, %35, %cst_24 {dimension_numbers = #tpu.dot_dimension_numbers<[1], [0], [0], [1], [0, 0, 1, 1], [], []>} : vector<8x8xf32>, vector<8x32xf32>, vector<8x32xf32> -> vector<8x32xf32>
    %37 = arith.addf %18, %36 : vector<8x32xf32>
    %38 = vector.extract_strided_slice %6 {offsets = [0, 8], sizes = [8, 8], strides = [1, 1]} : vector<8x32xf32> to vector<8x8xf32>
    %39 = vector.extract_strided_slice %11 {offsets = [0, 8], sizes = [8, 8], strides = [1, 1]} : vector<8x32xf32> to vector<8x8xf32>
    %40 = vector.extract_strided_slice %16 {offsets = [0, 8], sizes = [8, 8], strides = [1, 1]} : vector<8x32xf32> to vector<8x8xf32>
    "tpu.trace_start"() <{level = 10 : i32, message = "qd,kd->qk"}> : () -> ()
    %cst_25 = arith.constant dense<0.000000e+00> : vector<8x8xf32>
    %41 = tpu.matmul %38, %39, %cst_25 {dimension_numbers = #tpu.dot_dimension_numbers<[1], [1], [0], [0], [0, 0, 1, 0], [], []>} : vector<8x8xf32>, vector<8x8xf32>, vector<8x8xf32> -> vector<8x8xf32>
    "tpu.trace_stop"() : () -> ()
    %cst_26 = arith.constant 0.353553385 : f32
    %42 = vector.broadcast %cst_26 : f32 to vector<8x8xf32>
    %43 = arith.mulf %41, %42 : vector<8x8xf32>
    %cst_27 = arith.constant dense<0xFF800000> : vector<8xf32>
    %44 = vector.multi_reduction <maximumf>, %43, %cst_27 [1] : vector<8x8xf32> to vector<8xf32>
    %45 = vector.shape_cast %44 : vector<8xf32> to vector<8x1xf32>
    %46 = vector.broadcast %45 : vector<8x1xf32> to vector<8x8xf32>
    %47 = arith.subf %43, %46 : vector<8x8xf32>
    %48 = math.exp %47 : vector<8x8xf32>
    %cst_28 = arith.constant dense<0.000000e+00> : vector<8xf32>
    %49 = vector.multi_reduction <add>, %48, %cst_28 [1] : vector<8x8xf32> to vector<8xf32>
    %50 = vector.shape_cast %49 : vector<8xf32> to vector<8x1xf32>
    %51 = vector.broadcast %50 : vector<8x1xf32> to vector<8x8xf32>
    %52 = arith.divf %48, %51 : vector<8x8xf32>
    %cst_29 = arith.constant dense<0.000000e+00> : vector<8x8xf32>
    %53 = tpu.matmul %52, %40, %cst_29 {dimension_numbers = #tpu.dot_dimension_numbers<[1], [0], [0], [1], [0, 0, 1, 1], [], []>} : vector<8x8xf32>, vector<8x8xf32>, vector<8x8xf32> -> vector<8x8xf32>
    %54 = vector.extract_strided_slice %17 {offsets = [8, 0], sizes = [8, 32], strides = [1, 1]} : vector<32x32xf32> to vector<8x32xf32>
    %cst_30 = arith.constant dense<0.000000e+00> : vector<8x32xf32>
    %55 = tpu.matmul %53, %54, %cst_30 {dimension_numbers = #tpu.dot_dimension_numbers<[1], [0], [0], [1], [0, 0, 1, 1], [], []>} : vector<8x8xf32>, vector<8x32xf32>, vector<8x32xf32> -> vector<8x32xf32>
    %56 = arith.addf %37, %55 : vector<8x32xf32>
    %57 = vector.extract_strided_slice %6 {offsets = [0, 16], sizes = [8, 8], strides = [1, 1]} : vector<8x32xf32> to vector<8x8xf32>
    %58 = vector.extract_strided_slice %11 {offsets = [0, 16], sizes = [8, 8], strides = [1, 1]} : vector<8x32xf32> to vector<8x8xf32>
    %59 = vector.extract_strided_slice %16 {offsets = [0, 16], sizes = [8, 8], strides = [1, 1]} : vector<8x32xf32> to vector<8x8xf32>
    "tpu.trace_start"() <{level = 10 : i32, message = "qd,kd->qk"}> : () -> ()
    %cst_31 = arith.constant dense<0.000000e+00> : vector<8x8xf32>
    %60 = tpu.matmul %57, %58, %cst_31 {dimension_numbers = #tpu.dot_dimension_numbers<[1], [1], [0], [0], [0, 0, 1, 0], [], []>} : vector<8x8xf32>, vector<8x8xf32>, vector<8x8xf32> -> vector<8x8xf32>
    "tpu.trace_stop"() : () -> ()
    %cst_32 = arith.constant 0.353553385 : f32
    %61 = vector.broadcast %cst_32 : f32 to vector<8x8xf32>
    %62 = arith.mulf %60, %61 : vector<8x8xf32>
    %cst_33 = arith.constant dense<0xFF800000> : vector<8xf32>
    %63 = vector.multi_reduction <maximumf>, %62, %cst_33 [1] : vector<8x8xf32> to vector<8xf32>
    %64 = vector.shape_cast %63 : vector<8xf32> to vector<8x1xf32>
    %65 = vector.broadcast %64 : vector<8x1xf32> to vector<8x8xf32>
    %66 = arith.subf %62, %65 : vector<8x8xf32>
    %67 = math.exp %66 : vector<8x8xf32>
    %cst_34 = arith.constant dense<0.000000e+00> : vector<8xf32>
    %68 = vector.multi_reduction <add>, %67, %cst_34 [1] : vector<8x8xf32> to vector<8xf32>
    %69 = vector.shape_cast %68 : vector<8xf32> to vector<8x1xf32>
    %70 = vector.broadcast %69 : vector<8x1xf32> to vector<8x8xf32>
    %71 = arith.divf %67, %70 : vector<8x8xf32>
    %cst_35 = arith.constant dense<0.000000e+00> : vector<8x8xf32>
    %72 = tpu.matmul %71, %59, %cst_35 {dimension_numbers = #tpu.dot_dimension_numbers<[1], [0], [0], [1], [0, 0, 1, 1], [], []>} : vector<8x8xf32>, vector<8x8xf32>, vector<8x8xf32> -> vector<8x8xf32>
    %73 = vector.extract_strided_slice %17 {offsets = [16, 0], sizes = [8, 32], strides = [1, 1]} : vector<32x32xf32> to vector<8x32xf32>
    %cst_36 = arith.constant dense<0.000000e+00> : vector<8x32xf32>
    %74 = tpu.matmul %72, %73, %cst_36 {dimension_numbers = #tpu.dot_dimension_numbers<[1], [0], [0], [1], [0, 0, 1, 1], [], []>} : vector<8x8xf32>, vector<8x32xf32>, vector<8x32xf32> -> vector<8x32xf32>
    %75 = arith.addf %56, %74 : vector<8x32xf32>
    %76 = vector.extract_strided_slice %6 {offsets = [0, 24], sizes = [8, 8], strides = [1, 1]} : vector<8x32xf32> to vector<8x8xf32>
    %77 = vector.extract_strided_slice %11 {offsets = [0, 24], sizes = [8, 8], strides = [1, 1]} : vector<8x32xf32> to vector<8x8xf32>
    %78 = vector.extract_strided_slice %16 {offsets = [0, 24], sizes = [8, 8], strides = [1, 1]} : vector<8x32xf32> to vector<8x8xf32>
    "tpu.trace_start"() <{level = 10 : i32, message = "qd,kd->qk"}> : () -> ()
    %cst_37 = arith.constant dense<0.000000e+00> : vector<8x8xf32>
    %79 = tpu.matmul %76, %77, %cst_37 {dimension_numbers = #tpu.dot_dimension_numbers<[1], [1], [0], [0], [0, 0, 1, 0], [], []>} : vector<8x8xf32>, vector<8x8xf32>, vector<8x8xf32> -> vector<8x8xf32>
    "tpu.trace_stop"() : () -> ()
    %cst_38 = arith.constant 0.353553385 : f32
    %80 = vector.broadcast %cst_38 : f32 to vector<8x8xf32>
    %81 = arith.mulf %79, %80 : vector<8x8xf32>
    %cst_39 = arith.constant dense<0xFF800000> : vector<8xf32>
    %82 = vector.multi_reduction <maximumf>, %81, %cst_39 [1] : vector<8x8xf32> to vector<8xf32>
    %83 = vector.shape_cast %82 : vector<8xf32> to vector<8x1xf32>
    %84 = vector.broadcast %83 : vector<8x1xf32> to vector<8x8xf32>
    %85 = arith.subf %81, %84 : vector<8x8xf32>
    %86 = math.exp %85 : vector<8x8xf32>
    %cst_40 = arith.constant dense<0.000000e+00> : vector<8xf32>
    %87 = vector.multi_reduction <add>, %86, %cst_40 [1] : vector<8x8xf32> to vector<8xf32>
    %88 = vector.shape_cast %87 : vector<8xf32> to vector<8x1xf32>
    %89 = vector.broadcast %88 : vector<8x1xf32> to vector<8x8xf32>
    %90 = arith.divf %86, %89 : vector<8x8xf32>
    %cst_41 = arith.constant dense<0.000000e+00> : vector<8x8xf32>
    %91 = tpu.matmul %90, %78, %cst_41 {dimension_numbers = #tpu.dot_dimension_numbers<[1], [0], [0], [1], [0, 0, 1, 1], [], []>} : vector<8x8xf32>, vector<8x8xf32>, vector<8x8xf32> -> vector<8x8xf32>
    %92 = vector.extract_strided_slice %17 {offsets = [24, 0], sizes = [8, 32], strides = [1, 1]} : vector<32x32xf32> to vector<8x32xf32>
    %cst_42 = arith.constant dense<0.000000e+00> : vector<8x32xf32>
    %93 = tpu.matmul %91, %92, %cst_42 {dimension_numbers = #tpu.dot_dimension_numbers<[1], [0], [0], [1], [0, 0, 1, 1], [], []>} : vector<8x8xf32>, vector<8x32xf32>, vector<8x32xf32> -> vector<8x32xf32>
    %94 = arith.addf %75, %93 : vector<8x32xf32>
    %c0_43 = arith.constant 0 : index
    %c0_44 = arith.constant 0 : index
    %95 = vector.load %arg9[%c0_43, %c0_44] : memref<1x32xf32, #tpu.memory_space<vmem>>, vector<1x32xf32>
    %96 = vector.broadcast %95 : vector<1x32xf32> to vector<8x32xf32>
    %97 = arith.addf %94, %96 : vector<8x32xf32>
    %c0_45 = arith.constant 0 : index
    %c0_46 = arith.constant 0 : index
    %c0_47 = arith.constant 0 : index
    %98 = vector.load %arg10[%c0_45, %c0_46, %c0_47] : memref<1x8x32xf32, #tpu.memory_space<vmem>>, vector<1x8x32xf32>
    %99 = vector.shape_cast %98 : vector<1x8x32xf32> to vector<8x32xf32>
    %100 = vector.shape_cast %97 : vector<8x32xf32> to vector<1x8x32xf32>
    tpu.vector_store %arg10[%c0_45, %c0_46, %c0_47], %100 {strides = array<i32>} : memref<1x8x32xf32, #tpu.memory_space<vmem>>, vector<1x8x32xf32>,
    return
  }
  func.func @transform_0(%arg0: i32) -> (i32, i32, i32) {
    %c0_i32 = arith.constant 0 : i32
    %c0_i32_0 = arith.constant 0 : i32
    %c0_i32_1 = arith.constant 0 : i32
    return %arg0, %c0_i32, %c0_i32_0 : i32, i32, i32
  }
  func.func @transform_1(%arg0: i32) -> (i32, i32) {
    %c0_i32 = arith.constant 0 : i32
    %c0_i32_0 = arith.constant 0 : i32
    %c0_i32_1 = arith.constant 0 : i32
    return %c0_i32, %c0_i32_0 : i32, i32
  }
  func.func @transform_2(%arg0: i32) -> (i32, i32) {
    %c0_i32 = arith.constant 0 : i32
    %c0_i32_0 = arith.constant 0 : i32
    %c0_i32_1 = arith.constant 0 : i32
    return %c0_i32, %c0_i32_0 : i32, i32
  }
  func.func @transform_3(%arg0: i32) -> (i32, i32) {
    %c0_i32 = arith.constant 0 : i32
    %c0_i32_0 = arith.constant 0 : i32
    %c0_i32_1 = arith.constant 0 : i32
    return %c0_i32, %c0_i32_0 : i32, i32
  }
  func.func @transform_4(%arg0: i32) -> (i32, i32) {
    %c0_i32 = arith.constant 0 : i32
    %c0_i32_0 = arith.constant 0 : i32
    %c0_i32_1 = arith.constant 0 : i32
    return %c0_i32, %c0_i32_0 : i32, i32
  }
  func.func @transform_5(%arg0: i32) -> (i32, i32) {
    %c0_i32 = arith.constant 0 : i32
    %c0_i32_0 = arith.constant 0 : i32
    %c0_i32_1 = arith.constant 0 : i32
    return %c0_i32, %c0_i32_0 : i32, i32
  }
  func.func @transform_6(%arg0: i32) -> (i32, i32) {
    %c0_i32 = arith.constant 0 : i32
    %c0_i32_0 = arith.constant 0 : i32
    %c0_i32_1 = arith.constant 0 : i32
    return %c0_i32, %c0_i32_0 : i32, i32
  }
  func.func @transform_7(%arg0: i32) -> (i32, i32) {
    %c0_i32 = arith.constant 0 : i32
    %c0_i32_0 = arith.constant 0 : i32
    %c0_i32_1 = arith.constant 0 : i32
    return %c0_i32, %c0_i32_0 : i32, i32
  }
  func.func @transform_8(%arg0: i32) -> (i32, i32) {
    %c0_i32 = arith.constant 0 : i32
    %c0_i32_0 = arith.constant 0 : i32
    %c0_i32_1 = arith.constant 0 : i32
    return %c0_i32, %c0_i32_0 : i32, i32
  }
  func.func @transform_9(%arg0: i32) -> (i32, i32, i32) {
    %c0_i32 = arith.constant 0 : i32
    %c0_i32_0 = arith.constant 0 : i32
    %c0_i32_1 = arith.constant 0 : i32
    return %arg0, %c0_i32, %c0_i32_0 : i32, i32, i32
  }
}

</mosaic_0001>

<llo_original>
// kernel: tpu_custom_call.1
$region0: #{tpu_custom_call.1}
  #allocation0 [shape = 'u32[]', space=smem, size = 0x4, offset = 0x4, fixed_abs, tag = 'smem constant byte address 0x4 - core index']
  #allocation1 [shape = 'u32[72,128]{1,0:T(1,128)}', space=vmem, size = 0x9000, scoped, tag = 'internal scratch']
  %s0 = inlined_call_operand.hbm [shape: f32[2,8,32], index: 0, kind: input, shape index: {}]
  %s1 = inlined_call_operand.hbm [shape: f32[32,32], index: 1, kind: input, shape index: {}]
  %s2 = inlined_call_operand.hbm [shape: f32[32,32], index: 2, kind: input, shape index: {}]
  %s3 = inlined_call_operand.hbm [shape: f32[32,32], index: 3, kind: input, shape index: {}]
  %s4 = inlined_call_operand.vmem [shape: f32[1,32], index: 4, kind: input, shape index: {}]
  %s5 = inlined_call_operand.vmem [shape: f32[1,32], index: 5, kind: input, shape index: {}]
  %s6 = inlined_call_operand.vmem [shape: f32[1,32], index: 6, kind: input, shape index: {}]
  %s7 = inlined_call_operand.hbm [shape: f32[32,32], index: 7, kind: input, shape index: {}]
  %s8 = inlined_call_operand.vmem [shape: f32[1,32], index: 8, kind: input, shape index: {}]
  %s9 = inlined_call_operand.hbm [shape: f32[2,8,32], index: 9, kind: output, shape index: {}]
  %s10 = sld [smem:[#allocation0]]
  $region89: #{tpu_custom_call.1} parent=0
    _
  %s12 = ssub.s32 1, %s10
  %s13 = scalar_select 0, %s12, %s10
  $region1: #{tpu_custom_call.1} parent=0
    #allocation2 [shape = 'u8[8192]{0}', space=vmem, size = 0x2000, scoped, tag = 'input window, operand 0']
    #allocation3 [shape = 's32[2]{0}', space=sflag, size = 0x8, scoped, tag = 'scoped memory for tpu_custom_call.1']
    #allocation4 [shape = 's32[2]{0}', space=sflag, size = 0x8, scoped, tag = 'scoped memory for tpu_custom_call.1']
    #allocation5 [shape = 'u8[16384]{0}', space=vmem, size = 0x4000, scoped, tag = 'input window, operand 1, single buffered']
    #allocation6 [shape = 's32[1]{0}', space=sflag, size = 0x4, scoped, tag = 'scoped memory for tpu_custom_call.1']
    #allocation7 [shape = 'u8[16384]{0}', space=vmem, size = 0x4000, scoped, tag = 'input window, operand 2, single buffered']
    #allocation8 [shape = 'u8[16384]{0}', space=vmem, size = 0x4000, scoped, tag = 'input window, operand 3, single buffered']
    #allocation9 [shape = 's32[1]{0}', space=sflag, size = 0x4, scoped, tag = 'scoped memory for tpu_custom_call.1']
    #allocation10 [shape = 'u8[16384]{0}', space=vmem, size = 0x4000, scoped, tag = 'input window, operand 7, single buffered']
    #allocation11 [shape = 'u8[8192]{0}', space=vmem, size = 0x2000, scoped, tag = 'output window, operand 0']
    %14 = vsyncpa [#allocation3], 0
    %s15 = scalar_lea.sflag [#allocation3], 1
    %16 = vsyncpa %s15, 0
    %17 = vsyncpa [#allocation6], 0
    %18 = vsyncpa [#allocation9], 0
    %19 = vsyncpa [#allocation4], 0
    %s20 = scalar_lea.sflag [#allocation4], 1
    %21 = vsyncpa %s20, 0
    loop: start=0, step=1, limit=4
    $region2: #{tpu_custom_call.1} parent=1 // loop_pre_header
      _
    $region3: #{tpu_custom_call.1} parent=1 // loop_header
      %s23 = sphi 0, %s27
      %p24 = scmp.ge.s32.totalorder %s23, 4
      %s33 = sphi 0, %s35
      %s36 = sphi 0, %s33
      %s37 = sphi 0, %s36
      %s53 = sphi 0, %s37
      %s57 = sphi 0, %s57
      %s59 = sphi 0, %s57
      %s60 = sphi 0, %s59
      %s74 = sphi 0, %s60
      %s78 = sphi 0, %s78
      %s80 = sphi 0, %s78
      %s81 = sphi 0, %s80
      %s95 = sphi 0, %s81
      %s99 = sphi 0, %s99
      %s101 = sphi 0, %s99
      %s102 = sphi 0, %s101
      %s116 = sphi 0, %s102
      %s120 = sphi 0, %s120
      %s122 = sphi 0, %s120
      %s123 = sphi 0, %s122
      %s137 = sphi 0, %s123
      %s141 = sphi 0, %s141
      %s143 = sphi 0, %s141
      %s144 = sphi 0, %s143
      %s158 = sphi 0, %s144
      %s162 = sphi 0, %s162
      %s164 = sphi 0, %s162
      %s165 = sphi 0, %s164
      %s179 = sphi 0, %s165
      %s183 = sphi 0, %s183
      %s185 = sphi 0, %s183
      %s186 = sphi 0, %s185
      %s200 = sphi 0, %s186
      %s204 = sphi 0, %s204
      %s206 = sphi 0, %s204
      %s207 = sphi 0, %s206
      %s221 = sphi 0, %s207
      %s227 = sphi 0, %s229
      %s230 = sphi 0, %s227
      %s231 = sphi 0, %s230
      %s247 = sphi 0, %s231
    $region4: #{tpu_custom_call.1} parent=1 // loop_header_branch
      %26 = sbr.rel (%p24) target = $region8
    $region5: #{tpu_custom_call.1} parent=1 // loop_body
      %s28 = ssub.s32 %s23, 1
      %s29 = ssub.s32 %s23, 2
      %s30 = sadd.s32 %s23, 1
      %s31 = ssub.s32 %s23, %s30
      %p32 = scmp.eq.s32.totalorder %s31, 0
      %s34 = sadd.s32 %s33, 1
      %s35 = scalar_select %p32, %s33, %s34
      %p38 = pneg %p32
      %p39 = scmp.eq.s32.totalorder %s23, 1
      %p40 = por %p38, %p39
      %p41 = scmp.ne.s32.totalorder %s33, %s36
      %p42 = scmp.eq.s32.totalorder %s23, 0
      %p43 = por %p41, %p42
      %p44 = scmp.ne.s32.totalorder %s33, %s36
      %p45 = scmp.eq.s32.totalorder %s28, 1
      %p46 = por %p44, %p45
      %p47 = scmp.ne.s32.totalorder %s36, %s37
      %p48 = scmp.eq.s32.totalorder %s28, 0
      %p49 = por %p47, %p48
      %p50 = scmp.ne.s32.totalorder %s36, %s37
      %p51 = scmp.eq.s32.totalorder %s29, 1
      %p52 = por %p50, %p51
      %p54 = scmp.ne.s32.totalorder %s37, %s53
      %p55 = scmp.eq.s32.totalorder %s29, 0
      %p56 = por %p54, %p55
      %s58 = sadd.s32 %s57, 1
      %p61 = scmp.eq.s32.totalorder %s23, 1
      %p62 = scmp.ne.s32.totalorder %s57, %s59
      %p63 = scmp.eq.s32.totalorder %s23, 0
      %p64 = por %p62, %p63
      %p65 = scmp.ne.s32.totalorder %s57, %s59
      %p66 = scmp.eq.s32.totalorder %s28, 1
      %p67 = por %p65, %p66
      %p68 = scmp.ne.s32.totalorder %s59, %s60
      %p69 = scmp.eq.s32.totalorder %s28, 0
      %p70 = por %p68, %p69
      %p71 = scmp.ne.s32.totalorder %s59, %s60
      %p72 = scmp.eq.s32.totalorder %s29, 1
      %p73 = por %p71, %p72
      %p75 = scmp.ne.s32.totalorder %s60, %s74
      %p76 = scmp.eq.s32.totalorder %s29, 0
      %p77 = por %p75, %p76
      %s79 = sadd.s32 %s78, 1
      %p82 = scmp.eq.s32.totalorder %s23, 1
      %p83 = scmp.ne.s32.totalorder %s78, %s80
      %p84 = scmp.eq.s32.totalorder %s23, 0
      %p85 = por %p83, %p84
      %p86 = scmp.ne.s32.totalorder %s78, %s80
      %p87 = scmp.eq.s32.totalorder %s28, 1
      %p88 = por %p86, %p87
      %p89 = scmp.ne.s32.totalorder %s80, %s81
      %p90 = scmp.eq.s32.totalorder %s28, 0
      %p91 = por %p89, %p90
      %p92 = scmp.ne.s32.totalorder %s80, %s81
      %p93 = scmp.eq.s32.totalorder %s29, 1
      %p94 = por %p92, %p93
      %p96 = scmp.ne.s32.totalorder %s81, %s95
      %p97 = scmp.eq.s32.totalorder %s29, 0
      %p98 = por %p96, %p97
      %s100 = sadd.s32 %s99, 1
      %p103 = scmp.eq.s32.totalorder %s23, 1
      %p104 = scmp.ne.s32.totalorder %s99, %s101
      %p105 = scmp.eq.s32.totalorder %s23, 0
      %p106 = por %p104, %p105
      %p107 = scmp.ne.s32.totalorder %s99, %s101
      %p108 = scmp.eq.s32.totalorder %s28, 1
      %p109 = por %p107, %p108
      %p110 = scmp.ne.s32.totalorder %s101, %s102
      %p111 = scmp.eq.s32.totalorder %s28, 0
      %p112 = por %p110, %p111
      %p113 = scmp.ne.s32.totalorder %s101, %s102
      %p114 = scmp.eq.s32.totalorder %s29, 1
      %p115 = por %p113, %p114
      %p117 = scmp.ne.s32.totalorder %s102, %s116
      %p118 = scmp.eq.s32.totalorder %s29, 0
      %p119 = por %p117, %p118
      %s121 = sadd.s32 %s120, 1
      %p124 = scmp.eq.s32.totalorder %s23, 1
      %p125 = scmp.ne.s32.totalorder %s120, %s122
      %p126 = scmp.eq.s32.totalorder %s23, 0
      %p127 = por %p125, %p126
      %p128 = scmp.ne.s32.totalorder %s120, %s122
      %p129 = scmp.eq.s32.totalorder %s28, 1
      %p130 = por %p128, %p129
      %p131 = scmp.ne.s32.totalorder %s122, %s123
      %p132 = scmp.eq.s32.totalorder %s28, 0
      %p133 = por %p131, %p132
      %p134 = scmp.ne.s32.totalorder %s122, %s123
      %p135 = scmp.eq.s32.totalorder %s29, 1
      %p136 = por %p134, %p135
      %p138 = scmp.ne.s32.totalorder %s123, %s137
      %p139 = scmp.eq.s32.totalorder %s29, 0
      %p140 = por %p138, %p139
      %s142 = sadd.s32 %s141, 1
      %p145 = scmp.eq.s32.totalorder %s23, 1
      %p146 = scmp.ne.s32.totalorder %s141, %s143
      %p147 = scmp.eq.s32.totalorder %s23, 0
      %p148 = por %p146, %p147
      %p149 = scmp.ne.s32.totalorder %s141, %s143
      %p150 = scmp.eq.s32.totalorder %s28, 1
      %p151 = por %p149, %p150
      %p152 = scmp.ne.s32.totalorder %s143, %s144
      %p153 = scmp.eq.s32.totalorder %s28, 0
      %p154 = por %p152, %p153
      %p155 = scmp.ne.s32.totalorder %s143, %s144
      %p156 = scmp.eq.s32.totalorder %s29, 1
      %p157 = por %p155, %p156
      %p159 = scmp.ne.s32.totalorder %s144, %s158
      %p160 = scmp.eq.s32.totalorder %s29, 0
      %p161 = por %p159, %p160
      %s163 = sadd.s32 %s162, 1
      %p166 = scmp.eq.s32.totalorder %s23, 1
      %p167 = scmp.ne.s32.totalorder %s162, %s164
      %p168 = scmp.eq.s32.totalorder %s23, 0
      %p169 = por %p167, %p168
      %p170 = scmp.ne.s32.totalorder %s162, %s164
      %p171 = scmp.eq.s32.totalorder %s28, 1
      %p172 = por %p170, %p171
      %p173 = scmp.ne.s32.totalorder %s164, %s165
      %p174 = scmp.eq.s32.totalorder %s28, 0
      %p175 = por %p173, %p174
      %p176 = scmp.ne.s32.totalorder %s164, %s165
      %p177 = scmp.eq.s32.totalorder %s29, 1
      %p178 = por %p176, %p177
      %p180 = scmp.ne.s32.totalorder %s165, %s179
      %p181 = scmp.eq.s32.totalorder %s29, 0
      %p182 = por %p180, %p181
      %s184 = sadd.s32 %s183, 1
      %p187 = scmp.eq.s32.totalorder %s23, 1
      %p188 = scmp.ne.s32.totalorder %s183, %s185
      %p189 = scmp.eq.s32.totalorder %s23, 0
      %p190 = por %p188, %p189
      %p191 = scmp.ne.s32.totalorder %s183, %s185
      %p192 = scmp.eq.s32.totalorder %s28, 1
      %p193 = por %p191, %p192
      %p194 = scmp.ne.s32.totalorder %s185, %s186
      %p195 = scmp.eq.s32.totalorder %s28, 0
      %p196 = por %p194, %p195
      %p197 = scmp.ne.s32.totalorder %s185, %s186
      %p198 = scmp.eq.s32.totalorder %s29, 1
      %p199 = por %p197, %p198
      %p201 = scmp.ne.s32.totalorder %s186, %s200
      %p202 = scmp.eq.s32.totalorder %s29, 0
      %p203 = por %p201, %p202
      %s205 = sadd.s32 %s204, 1
      %p208 = scmp.eq.s32.totalorder %s23, 1
      %p209 = scmp.ne.s32.totalorder %s204, %s206
      %p210 = scmp.eq.s32.totalorder %s23, 0
      %p211 = por %p209, %p210
      %p212 = scmp.ne.s32.totalorder %s204, %s206
      %p213 = scmp.eq.s32.totalorder %s28, 1
      %p214 = por %p212, %p213
      %p215 = scmp.ne.s32.totalorder %s206, %s207
      %p216 = scmp.eq.s32.totalorder %s28, 0
      %p217 = por %p215, %p216
      %p218 = scmp.ne.s32.totalorder %s206, %s207
      %p219 = scmp.eq.s32.totalorder %s29, 1
      %p220 = por %p218, %p219
      %p222 = scmp.ne.s32.totalorder %s207, %s221
      %p223 = scmp.eq.s32.totalorder %s29, 0
      %p224 = por %p222, %p223
      %s225 = ssub.s32 %s23, %s30
      %p226 = scmp.eq.s32.totalorder %s225, 0
      %s228 = sadd.s32 %s227, 1
      %s229 = scalar_select %p226, %s227, %s228
      %p232 = pneg %p226
      %p233 = scmp.eq.s32.totalorder %s23, 1
      %p234 = por %p232, %p233
      %p235 = scmp.ne.s32.totalorder %s227, %s230
      %p236 = scmp.eq.s32.totalorder %s23, 0
      %p237 = por %p235, %p236
      %p238 = scmp.ne.s32.totalorder %s227, %s230
      %p239 = scmp.eq.s32.totalorder %s28, 1
      %p240 = por %p238, %p239
      %p241 = scmp.ne.s32.totalorder %s230, %s231
      %p242 = scmp.eq.s32.totalorder %s28, 0
      %p243 = por %p241, %p242
      %p244 = scmp.ne.s32.totalorder %s230, %s231
      %p245 = scmp.eq.s32.totalorder %s29, 1
      %p246 = por %p244, %p245
      %p248 = scmp.ne.s32.totalorder %s231, %s247
      %p249 = scmp.eq.s32.totalorder %s29, 0
      %p250 = por %p248, %p249
      %p251 = scmp.le.s32.totalorder 1, %s23
      %p252 = scmp.lt.s32.totalorder %s23, 3
      %p253 = pnand %p251, %p252
      %p254 = pneg %p253
      // Predicated region
      $region9: #{tpu_custom_call.1} parent=5 // pred_check
        _
      $region10: #{tpu_custom_call.1} parent=5 // pred_check_branch
        %256 = sbr.rel (%p253) target = $region12
      $region11: #{tpu_custom_call.1} parent=5 // pred_region
        %s257 = ssub.s32 %s23, 1
        // Predicated region
        $region13: #{tpu_custom_call.1} parent=11 // pred_check
          %p258 = pneg %p70
        $region14: #{tpu_custom_call.1} parent=11 // pred_check_branch
          %260 = sbr.rel (%p258) target = $region16
        $region15: #{tpu_custom_call.1} parent=11 // pred_region
          %262 = vsyncadd [#allocation6], 0
          %s263 = sshll.u32 %s1, 4
          %s264 = int_to_ptr.hbm [resolvable:$true] %s263
          %s265 = sshll.u32 [#allocation5], 4
          %s266 = int_to_ptr.vmem [resolvable:$true] %s265
          %271 = dma.hbm_to_vmem [thread:$0]  %s264, 512, %s266, [#allocation6], 128, 128, 8
        $region16: #{tpu_custom_call.1} parent=11 // pred_fallthru
          _
        // Predicated region
        $region17: #{tpu_custom_call.1} parent=11 // pred_check
          %p272 = pneg %p91
        $region18: #{tpu_custom_call.1} parent=11 // pred_check_branch
          %274 = sbr.rel (%p272) target = $region20
        $region19: #{tpu_custom_call.1} parent=11 // pred_region
          %276 = vsyncadd [#allocation6], 0
          %s277 = sshll.u32 %s2, 4
          %s278 = int_to_ptr.hbm [resolvable:$true] %s277
          %s279 = sshll.u32 [#allocation7], 4
          %s280 = int_to_ptr.vmem [resolvable:$true] %s279
          %285 = dma.hbm_to_vmem [thread:$0]  %s278, 512, %s280, [#allocation6], 128, 128, 8
        $region20: #{tpu_custom_call.1} parent=11 // pred_fallthru
          _
        // Predicated region
        $region21: #{tpu_custom_call.1} parent=11 // pred_check
          %p286 = pneg %p112
        $region22: #{tpu_custom_call.1} parent=11 // pred_check_branch
          %288 = sbr.rel (%p286) target = $region24
        $region23: #{tpu_custom_call.1} parent=11 // pred_region
          %290 = vsyncadd [#allocation9], 0
          %s291 = sshll.u32 %s3, 4
          %s292 = int_to_ptr.hbm [resolvable:$true] %s291
          %s293 = sshll.u32 [#allocation8], 4
          %s294 = int_to_ptr.vmem [resolvable:$true] %s293
          %299 = dma.hbm_to_vmem [thread:$0]  %s292, 512, %s294, [#allocation9], 128, 128, 8
        $region24: #{tpu_custom_call.1} parent=11 // pred_fallthru
          _
        // Predicated region
        $region25: #{tpu_custom_call.1} parent=11 // pred_check
          %p300 = pneg %p133
        $region26: #{tpu_custom_call.1} parent=11 // pred_check_branch
          %302 = sbr.rel (%p300) target = $region28
        $region27: #{tpu_custom_call.1} parent=11 // pred_region
          _
        $region28: #{tpu_custom_call.1} parent=11 // pred_fallthru
          _
        // Predicated region
        $region29: #{tpu_custom_call.1} parent=11 // pred_check
          %p303 = pneg %p154
        $region30: #{tpu_custom_call.1} parent=11 // pred_check_branch
          %305 = sbr.rel (%p303) target = $region32
        $region31: #{tpu_custom_call.1} parent=11 // pred_region
          _
        $region32: #{tpu_custom_call.1} parent=11 // pred_fallthru
          _
        // Predicated region
        $region33: #{tpu_custom_call.1} parent=11 // pred_check
          %p306 = pneg %p175
        $region34: #{tpu_custom_call.1} parent=11 // pred_check_branch
          %308 = sbr.rel (%p306) target = $region36
        $region35: #{tpu_custom_call.1} parent=11 // pred_region
          _
        $region36: #{tpu_custom_call.1} parent=11 // pred_fallthru
          _
        // Predicated region
        $region37: #{tpu_custom_call.1} parent=11 // pred_check
          %p309 = pneg %p196
        $region38: #{tpu_custom_call.1} parent=11 // pred_check_branch
          %311 = sbr.rel (%p309) target = $region40
        $region39: #{tpu_custom_call.1} parent=11 // pred_region
          %313 = vsyncadd [#allocation9], 0
          %s314 = sshll.u32 %s7, 4
          %s315 = int_to_ptr.hbm [resolvable:$true] %s314
          %s316 = sshll.u32 [#allocation10], 4
          %s317 = int_to_ptr.vmem [resolvable:$true] %s316
          %322 = dma.hbm_to_vmem [thread:$0]  %s315, 512, %s317, [#allocation9], 128, 128, 8
        $region40: #{tpu_custom_call.1} parent=11 // pred_fallthru
          _
        // Predicated region
        $region41: #{tpu_custom_call.1} parent=11 // pred_check
          %p323 = pneg %p217
        $region42: #{tpu_custom_call.1} parent=11 // pred_check_branch
          %325 = sbr.rel (%p323) target = $region44
        $region43: #{tpu_custom_call.1} parent=11 // pred_region
          _
        $region44: #{tpu_custom_call.1} parent=11 // pred_fallthru
          _
      $region12: #{tpu_custom_call.1} parent=5 // pred_fallthru
        _
      %p326 = scmp.lt.s32.totalorder %s23, 2
      // Predicated region
      $region45: #{tpu_custom_call.1} parent=5 // pred_check
        %p327 = pneg %p326
      $region46: #{tpu_custom_call.1} parent=5 // pred_check_branch
        %329 = sbr.rel (%p327) target = $region48
      $region47: #{tpu_custom_call.1} parent=5 // pred_region
        // Predicated region
        $region49: #{tpu_custom_call.1} parent=47 // pred_check
          %p330 = pneg %p43
        $region50: #{tpu_custom_call.1} parent=47 // pred_check_branch
          %332 = sbr.rel (%p330) target = $region52
        $region51: #{tpu_custom_call.1} parent=47 // pred_region
          %s333 = sand.u32 %s33, 1
          %s334 = scalar_lea.sflag [#allocation3], %s333
          %s335 = sand.u32 %s33, 1
          %s336 = smul.addr %s335, 8
          %s337 = scalar_lea.vmem [#allocation2], %s336
          %339 = vsyncadd %s334, 0
          %s340 = smul.addr %s23, 8
          %s341 = scalar_lea.hbm %s0, %s340
          %s343 = sshll.u32 %s341, 4
          %s344 = int_to_ptr.hbm [resolvable:$true] %s343
          %s345 = sshll.u32 %s337, 4
          %s346 = int_to_ptr.vmem [resolvable:$true] %s345
          %348 = dma.hbm_to_vmem [thread:$0]  %s344, 128, %s346, %s334
        $region52: #{tpu_custom_call.1} parent=47 // pred_fallthru
          _
      $region48: #{tpu_custom_call.1} parent=5 // pred_fallthru
        _
      %p349 = scmp.le.s32.totalorder 1, %s23
      %p350 = scmp.lt.s32.totalorder %s23, 3
      %p351 = pnand %p349, %p350
      %p352 = pneg %p351
      // Predicated region
      $region53: #{tpu_custom_call.1} parent=5 // pred_check
        _
      $region54: #{tpu_custom_call.1} parent=5 // pred_check_branch
        %354 = sbr.rel (%p351) target = $region56
      $region55: #{tpu_custom_call.1} parent=5 // pred_region
        %s355 = ssub.s32 %s23, 1
        %s356 = sand.u32 %s36, 1
        %s357 = scalar_lea.sflag [#allocation3], %s356
        %s358 = sand.u32 %s36, 1
        %s359 = smul.addr %s358, 8
        %s360 = scalar_lea.vmem [#allocation2], %s359
        // Predicated region
        $region57: #{tpu_custom_call.1} parent=55 // pred_check
          %p361 = pneg %p49
        $region58: #{tpu_custom_call.1} parent=55 // pred_check_branch
          %363 = sbr.rel (%p361) target = $region60
        $region59: #{tpu_custom_call.1} parent=55 // pred_region
          %365 = dma.done %s357, 128
        $region60: #{tpu_custom_call.1} parent=55 // pred_fallthru
          _
        // Predicated region
        $region61: #{tpu_custom_call.1} parent=55 // pred_check
          %p366 = pneg %p70
        $region62: #{tpu_custom_call.1} parent=55 // pred_check_branch
          %368 = sbr.rel (%p366) target = $region64
        $region63: #{tpu_custom_call.1} parent=55 // pred_region
          %370 = dma.done [#allocation6], 512
        $region64: #{tpu_custom_call.1} parent=55 // pred_fallthru
          _
        // Predicated region
        $region65: #{tpu_custom_call.1} parent=55 // pred_check
          %p371 = pneg %p91
        $region66: #{tpu_custom_call.1} parent=55 // pred_check_branch
          %373 = sbr.rel (%p371) target = $region68
        $region67: #{tpu_custom_call.1} parent=55 // pred_region
          %375 = dma.done [#allocation6], 512
        $region68: #{tpu_custom_call.1} parent=55 // pred_fallthru
          _
        // Predicated region
        $region69: #{tpu_custom_call.1} parent=55 // pred_check
          %p376 = pneg %p112
        $region70: #{tpu_custom_call.1} parent=55 // pred_check_branch
          %378 = sbr.rel (%p376) target = $region72
        $region71: #{tpu_custom_call.1} parent=55 // pred_region
          %380 = dma.done [#allocation9], 512
        $region72: #{tpu_custom_call.1} parent=55 // pred_fallthru
          _
        // Predicated region
        $region73: #{tpu_custom_call.1} parent=55 // pred_check
          %p381 = pneg %p196
        $region74: #{tpu_custom_call.1} parent=55 // pred_check_branch
          %383 = sbr.rel (%p381) target = $region76
        $region75: #{tpu_custom_call.1} parent=55 // pred_region
          %385 = dma.done [#allocation9], 512
        $region76: #{tpu_custom_call.1} parent=55 // pred_fallthru
          _
        %s386 = sand.u32 %s36, 1
        %s387 = scalar_lea.sflag [#allocation3], %s386
        %s388 = sand.u32 %s36, 1
        %s389 = smul.addr %s388, 8
        %s390 = scalar_lea.vmem [#allocation2], %s389
        %p391 = pneg %p49
        %p392 = pneg %p46
        %p393 = pneg %p70
        %p394 = pneg %p67
        %p395 = pneg %p91
        %p396 = pneg %p88
        %p397 = pneg %p112
        %p398 = pneg %p109
        %p399 = pneg %p133
        %p400 = pneg %p130
        %p401 = pneg %p154
        %p402 = pneg %p151
        %p403 = pneg %p175
        %p404 = pneg %p172
        %p405 = pneg %p196
        %p406 = pneg %p193
        %p407 = pneg %p217
        %p408 = pneg %p214
        %p409 = pneg %p243
        %p410 = pneg %p240
        %s411 = sand.u32 %s230, 1
        %s412 = scalar_lea.sflag [#allocation4], %s411
        %s413 = sand.u32 %s230, 1
        %s414 = smul.addr %s413, 8
        %s415 = scalar_lea.vmem [#allocation11], %s414
        %v416 = vld [vmem:[%s360] sm:$0xff]
        %v417 = vld [vmem:[#allocation5] sm:$0xff]
        %v418 = vld [vmem:[#allocation5 + $0x8] sm:$0xff]
        %v419 = vld [vmem:[#allocation5 + $0x10] sm:$0xff]
        %v420 = vld [vmem:[#allocation5 + $0x18] sm:$0xff]
        %v421 = vld [vmem:[%s4] sm:$0x1]
        %v423 = vperm.slane %v421, 0
        %vm425 = vcmask 261120
        %v427 = vsel %vm425, %v416, 0
        %429 = vmatpush.msra.mxu0 0.0
        %430 = vmatpush.msra.mxu0 0.0
        %431 = vmatpush.msra.mxu0 0.0
        %432 = vmatpush.msra.mxu0 0.0
        %433 = vmatpush.msra.mxu0 0.0
        %434 = vmatpush.msra.mxu0 0.0
        %435 = vmatpush.msra.mxu0 0.0
        %436 = vmatpush.msra.mxu0 0.0
        %437 = vmatpush.msra.mxu0 0.0
        %438 = vmatpush.msra.mxu0 0.0
        %439 = vmatpush.msra.mxu0 0.0
        %440 = vmatpush.msra.mxu0 0.0
        %441 = vmatpush.msra.mxu0 %v420
        %442 = vmatpush.msra.mxu0 %v419
        %443 = vmatpush.msra.mxu0 %v418
        %444 = vmatpush.msra.mxu0 %v417
        %445 = vmatmul.f32.gmra.mxu0 %v427
        %v446 = vpop.f32.mrf.mxu0
        %v447 = vadd.f32 %v423, %v446
        %448 = vdwg.mxu0
        %v449 = vld [vmem:[#allocation7] sm:$0xff]
        %v450 = vld [vmem:[#allocation7 + $0x8] sm:$0xff]
        %v451 = vld [vmem:[#allocation7 + $0x10] sm:$0xff]
        %v452 = vld [vmem:[#allocation7 + $0x18] sm:$0xff]
        %v453 = vld [vmem:[%s5] sm:$0x1]
        %v455 = vperm.slane %v453, 0
        %457 = vmatpush.msra.mxu0 0.0
        %458 = vmatpush.msra.mxu0 0.0
        %459 = vmatpush.msra.mxu0 0.0
        %460 = vmatpush.msra.mxu0 0.0
        %461 = vmatpush.msra.mxu0 0.0
        %462 = vmatpush.msra.mxu0 0.0
        %463 = vmatpush.msra.mxu0 0.0
        %464 = vmatpush.msra.mxu0 0.0
        %465 = vmatpush.msra.mxu0 0.0
        %466 = vmatpush.msra.mxu0 0.0
        %467 = vmatpush.msra.mxu0 0.0
        %468 = vmatpush.msra.mxu0 0.0
        %469 = vmatpush.msra.mxu0 %v452
        %470 = vmatpush.msra.mxu0 %v451
        %471 = vmatpush.msra.mxu0 %v450
        %472 = vmatpush.msra.mxu0 %v449
        %473 = vmatmul.f32.gmra.mxu0 %v427
        %v474 = vpop.f32.mrf.mxu0
        %v475 = vadd.f32 %v455, %v474
        %476 = vdwg.mxu0
        %v477 = vld [vmem:[#allocation8] sm:$0xff]
        %v478 = vld [vmem:[#allocation8 + $0x8] sm:$0xff]
        %v479 = vld [vmem:[#allocation8 + $0x10] sm:$0xff]
        %v480 = vld [vmem:[#allocation8 + $0x18] sm:$0xff]
        %v481 = vld [vmem:[%s6] sm:$0x1]
        %v483 = vperm.slane %v481, 0
        %485 = vmatpush.msra.mxu0 0.0
        %486 = vmatpush.msra.mxu0 0.0
        %487 = vmatpush.msra.mxu0 0.0
        %488 = vmatpush.msra.mxu0 0.0
        %489 = vmatpush.msra.mxu0 0.0
        %490 = vmatpush.msra.mxu0 0.0
        %491 = vmatpush.msra.mxu0 0.0
        %492 = vmatpush.msra.mxu0 0.0
        %493 = vmatpush.msra.mxu0 0.0
        %494 = vmatpush.msra.mxu0 0.0
        %495 = vmatpush.msra.mxu0 0.0
        %496 = vmatpush.msra.mxu0 0.0
        %497 = vmatpush.msra.mxu0 %v480
        %498 = vmatpush.msra.mxu0 %v479
        %499 = vmatpush.msra.mxu0 %v478
        %500 = vmatpush.msra.mxu0 %v477
        %501 = vmatmul.f32.gmra.mxu0 %v427
        %v502 = vpop.f32.mrf.mxu0
        %v503 = vadd.f32 %v483, %v502
        %504 = vdwg.mxu0
        %v505 = vld [vmem:[#allocation10] sm:$0xff]
        %v506 = vld [vmem:[#allocation10 + $0x8] sm:$0xff]
        %v507 = vld [vmem:[#allocation10 + $0x10] sm:$0xff]
        %v508 = vld [vmem:[#allocation10 + $0x18] sm:$0xff]
        %vm509 = vcmask 64512
        %v511 = vsel %vm509, %v447, 0
        %v514 = vsel %vm509, %v475, 0
        %516 = vmatpush.xpose.msra.mxu0 0.0
        %517 = vmatpush.xpose.msra.mxu0 0.0
        %518 = vmatpush.xpose.msra.mxu0 0.0
        %519 = vmatpush.xpose.msra.mxu0 0.0
        %520 = vmatpush.xpose.msra.mxu0 0.0
        %521 = vmatpush.xpose.msra.mxu0 0.0
        %522 = vmatpush.xpose.msra.mxu0 0.0
        %523 = vmatpush.xpose.msra.mxu0 0.0
        %524 = vmatpush.xpose.msra.mxu0 0.0
        %525 = vmatpush.xpose.msra.mxu0 0.0
        %526 = vmatpush.xpose.msra.mxu0 0.0
        %527 = vmatpush.xpose.msra.mxu0 0.0
        %528 = vmatpush.xpose.msra.mxu0 0.0
        %529 = vmatpush.xpose.msra.mxu0 0.0
        %530 = vmatpush.xpose.msra.mxu0 0.0
        %531 = vmatpush.xpose.msra.mxu0 %v514
        %532 = vmatmul.f32.gmra.mxu0 %v511
        %v533 = vpop.f32.mrf.mxu0
        %v534 = vadd.f32 0.0, %v533
        %535 = vdwg.mxu0
        %v536 = vmul.f32 %v534, 0.35355338
        %v537 = vsel %vm509, %v536, -inf
        %538 = vmax.xlane.f32.xlu0 %v537
        %v539 = vpop.xlane.xlu0 %538
        %v540 = vsub.f32 %v536, %v539
        %v541 = vmul.f32 %v540, 1.442695
        %v542 = vpow.pop %v541
        %v543 = vsel %vm509, %v542, 0.0
        %544 = vadd.xlane.f32.xlu0 %v543
        %v545 = vpop.xlane.xlu0 %544
        %v546 = vrcp.pop %v545
        %v547 = vmul.f32 %v545, %v546
        %v548 = vsub.f32 1.0, %v547
        %v549 = vmul.f32 %v546, %v548
        %v550 = vadd.f32 %v546, %v549
        %vm551 = vweird.f32 %v545
        %vm552 = vweird.f32 %v546
        %vm553 = vmor %vm551, %vm552
        %v554 = vsel %vm553, %v546, %v550
        %v555 = vand.u32 2147483647, %v545
        %vm556 = vcmp.eq.f32.partialorder %v555, 8.507059e+37
        %v557 = vand.u32 %v545, 2147483648
        %v558 = vor.u32 1.1754944e-38, %v557
        %v559 = vsel %vm556, %v558, %v554
        %v560 = vmul.f32 %v542, %v559
        %v562 = vsel %vm509, %v560, 0
        %564 = vmatpush.msra.mxu0 0.0
        %565 = vmatpush.msra.mxu0 0.0
        %566 = vmatpush.msra.mxu0 0.0
        %567 = vmatpush.msra.mxu0 0.0
        %568 = vmatpush.msra.mxu0 0.0
        %569 = vmatpush.msra.mxu0 0.0
        %570 = vmatpush.msra.mxu0 0.0
        %571 = vmatpush.msra.mxu0 0.0
        %572 = vmatpush.msra.mxu0 0.0
        %573 = vmatpush.msra.mxu0 0.0
        %574 = vmatpush.msra.mxu0 0.0
        %575 = vmatpush.msra.mxu0 0.0
        %576 = vmatpush.msra.mxu0 0.0
        %577 = vmatpush.msra.mxu0 0.0
        %578 = vmatpush.msra.mxu0 0.0
        %579 = vmatpush.msra.mxu0 %v503
        %580 = vmatmul.f32.gmra.mxu0 %v562
        %v581 = vpop.f32.mrf.mxu0
        %v582 = vadd.f32 0.0, %v581
        %583 = vdwg.mxu0
        %584 = vrot.lane.b32.xlu0 %v447, 120
        %v585 = vpop.permute.xlu0 %584
        %586 = vrot.lane.b32.xlu0 %v475, 120
        %v587 = vpop.permute.xlu0 %586
        %v588 = vsel %vm509, %v585, 0
        %v590 = vsel %vm509, %v587, 0
        %592 = vmatpush.xpose.msra.mxu0 0.0
        %593 = vmatpush.xpose.msra.mxu0 0.0
        %594 = vmatpush.xpose.msra.mxu0 0.0
        %595 = vmatpush.xpose.msra.mxu0 0.0
        %596 = vmatpush.xpose.msra.mxu0 0.0
        %597 = vmatpush.xpose.msra.mxu0 0.0
        %598 = vmatpush.xpose.msra.mxu0 0.0
        %599 = vmatpush.xpose.msra.mxu0 0.0
        %600 = vmatpush.xpose.msra.mxu0 0.0
        %601 = vmatpush.xpose.msra.mxu0 0.0
        %602 = vmatpush.xpose.msra.mxu0 0.0
        %603 = vmatpush.xpose.msra.mxu0 0.0
        %604 = vmatpush.xpose.msra.mxu0 0.0
        %605 = vmatpush.xpose.msra.mxu0 0.0
        %606 = vmatpush.xpose.msra.mxu0 0.0
        %607 = vmatpush.xpose.msra.mxu0 %v590
        %608 = vmatmul.f32.gmra.mxu0 %v588
        %v609 = vpop.f32.mrf.mxu0
        %v610 = vadd.f32 0.0, %v609
        %611 = vdwg.mxu0
        %v612 = vmul.f32 %v610, 0.35355338
        %v613 = vsel %vm509, %v612, -inf
        %614 = vmax.xlane.f32.xlu0 %v613
        %v615 = vpop.xlane.xlu0 %614
        %v616 = vsub.f32 %v612, %v615
        %v617 = vmul.f32 %v616, 1.442695
        %v618 = vpow.pop %v617
        %v619 = vsel %vm509, %v618, 0.0
        %620 = vadd.xlane.f32.xlu0 %v619
        %v621 = vpop.xlane.xlu0 %620
        %v622 = vrcp.pop %v621
        %v623 = vmul.f32 %v621, %v622
        %v624 = vsub.f32 1.0, %v623
        %v625 = vmul.f32 %v622, %v624
        %v626 = vadd.f32 %v622, %v625
        %vm627 = vweird.f32 %v621
        %vm628 = vweird.f32 %v622
        %vm629 = vmor %vm627, %vm628
        %v630 = vsel %vm629, %v622, %v626
        %v631 = vand.u32 2147483647, %v621
        %vm632 = vcmp.eq.f32.partialorder %v631, 8.507059e+37
        %v633 = vand.u32 %v621, 2147483648
        %v634 = vor.u32 1.1754944e-38, %v633
        %v635 = vsel %vm632, %v634, %v630
        %v636 = vmul.f32 %v618, %v635
        %638 = vrot.lane.b32.xlu0 %v503, 120
        %v639 = vpop.permute.xlu0 %638
        %v642 = vsel %vm509, %v636, 0
        %644 = vmatpush.msra.mxu0 0.0
        %645 = vmatpush.msra.mxu0 0.0
        %646 = vmatpush.msra.mxu0 0.0
        %647 = vmatpush.msra.mxu0 0.0
        %648 = vmatpush.msra.mxu0 0.0
        %649 = vmatpush.msra.mxu0 0.0
        %650 = vmatpush.msra.mxu0 0.0
        %651 = vmatpush.msra.mxu0 0.0
        %652 = vmatpush.msra.mxu0 0.0
        %653 = vmatpush.msra.mxu0 0.0
        %654 = vmatpush.msra.mxu0 0.0
        %655 = vmatpush.msra.mxu0 0.0
        %656 = vmatpush.msra.mxu0 0.0
        %657 = vmatpush.msra.mxu0 0.0
        %658 = vmatpush.msra.mxu0 0.0
        %659 = vmatpush.msra.mxu0 %v639
        %660 = vmatmul.f32.gmra.mxu0 %v642
        %v661 = vpop.f32.mrf.mxu0
        %v662 = vadd.f32 0.0, %v661
        %663 = vdwg.mxu0
        %v665 = vsel %vm509, %v662, 0
        %667 = vmatpush.msra.mxu0 0.0
        %668 = vmatpush.msra.mxu0 0.0
        %669 = vmatpush.msra.mxu0 0.0
        %670 = vmatpush.msra.mxu0 0.0
        %671 = vmatpush.msra.mxu0 0.0
        %672 = vmatpush.msra.mxu0 0.0
        %673 = vmatpush.msra.mxu0 0.0
        %674 = vmatpush.msra.mxu0 0.0
        %675 = vmatpush.msra.mxu0 0.0
        %676 = vmatpush.msra.mxu0 0.0
        %677 = vmatpush.msra.mxu0 0.0
        %678 = vmatpush.msra.mxu0 0.0
        %679 = vmatpush.msra.mxu0 0.0
        %680 = vmatpush.msra.mxu0 0.0
        %681 = vmatpush.msra.mxu0 0.0
        %682 = vmatpush.msra.mxu0 %v506
        %683 = vmatmul.f32.gmra.mxu0 %v665
        %v684 = vpop.f32.mrf.mxu0
        %v685 = vadd.f32 0.0, %v684
        %686 = vdwg.mxu0
        %v688 = vsel %vm509, %v582, 0
        %690 = vmatpush.msra.mxu0 0.0
        %691 = vmatpush.msra.mxu0 0.0
        %692 = vmatpush.msra.mxu0 0.0
        %693 = vmatpush.msra.mxu0 0.0
        %694 = vmatpush.msra.mxu0 0.0
        %695 = vmatpush.msra.mxu0 0.0
        %696 = vmatpush.msra.mxu0 0.0
        %697 = vmatpush.msra.mxu0 0.0
        %698 = vmatpush.msra.mxu0 0.0
        %699 = vmatpush.msra.mxu0 0.0
        %700 = vmatpush.msra.mxu0 0.0
        %701 = vmatpush.msra.mxu0 0.0
        %702 = vmatpush.msra.mxu0 0.0
        %703 = vmatpush.msra.mxu0 0.0
        %704 = vmatpush.msra.mxu0 0.0
        %705 = vmatpush.msra.mxu0 %v505
        %706 = vmatmul.f32.gmra.mxu0 %v688
        %v707 = vpop.f32.mrf.mxu0
        %v708 = vadd.f32 %v685, %v707
        %709 = vdwg.mxu0
        %710 = vrot.lane.b32.xlu0 %v447, 112
        %v711 = vpop.permute.xlu0 %710
        %712 = vrot.lane.b32.xlu0 %v475, 112
        %v713 = vpop.permute.xlu0 %712
        %v714 = vsel %vm509, %v711, 0
        %v716 = vsel %vm509, %v713, 0
        %718 = vmatpush.xpose.msra.mxu0 0.0
        %719 = vmatpush.xpose.msra.mxu0 0.0
        %720 = vmatpush.xpose.msra.mxu0 0.0
        %721 = vmatpush.xpose.msra.mxu0 0.0
        %722 = vmatpush.xpose.msra.mxu0 0.0
        %723 = vmatpush.xpose.msra.mxu0 0.0
        %724 = vmatpush.xpose.msra.mxu0 0.0
        %725 = vmatpush.xpose.msra.mxu0 0.0
        %726 = vmatpush.xpose.msra.mxu0 0.0
        %727 = vmatpush.xpose.msra.mxu0 0.0
        %728 = vmatpush.xpose.msra.mxu0 0.0
        %729 = vmatpush.xpose.msra.mxu0 0.0
        %730 = vmatpush.xpose.msra.mxu0 0.0
        %731 = vmatpush.xpose.msra.mxu0 0.0
        %732 = vmatpush.xpose.msra.mxu0 0.0
        %733 = vmatpush.xpose.msra.mxu0 %v716
        %734 = vmatmul.f32.gmra.mxu0 %v714
        %v735 = vpop.f32.mrf.mxu0
        %v736 = vadd.f32 0.0, %v735
        %737 = vdwg.mxu0
        %v738 = vmul.f32 %v736, 0.35355338
        %v739 = vsel %vm509, %v738, -inf
        %740 = vmax.xlane.f32.xlu0 %v739
        %v741 = vpop.xlane.xlu0 %740
        %v742 = vsub.f32 %v738, %v741
        %v743 = vmul.f32 %v742, 1.442695
        %v744 = vpow.pop %v743
        %v745 = vsel %vm509, %v744, 0.0
        %746 = vadd.xlane.f32.xlu0 %v745
        %v747 = vpop.xlane.xlu0 %746
        %v748 = vrcp.pop %v747
        %v749 = vmul.f32 %v747, %v748
        %v750 = vsub.f32 1.0, %v749
        %v751 = vmul.f32 %v748, %v750
        %v752 = vadd.f32 %v748, %v751
        %vm753 = vweird.f32 %v747
        %vm754 = vweird.f32 %v748
        %vm755 = vmor %vm753, %vm754
        %v756 = vsel %vm755, %v748, %v752
        %v757 = vand.u32 2147483647, %v747
        %vm758 = vcmp.eq.f32.partialorder %v757, 8.507059e+37
        %v759 = vand.u32 %v747, 2147483648
        %v760 = vor.u32 1.1754944e-38, %v759
        %v761 = vsel %vm758, %v760, %v756
        %v762 = vmul.f32 %v744, %v761
        %763 = vrot.lane.b32.xlu0 %v503, 112
        %v764 = vpop.permute.xlu0 %763
        %v767 = vsel %vm509, %v762, 0
        %769 = vmatpush.msra.mxu0 0.0
        %770 = vmatpush.msra.mxu0 0.0
        %771 = vmatpush.msra.mxu0 0.0
        %772 = vmatpush.msra.mxu0 0.0
        %773 = vmatpush.msra.mxu0 0.0
        %774 = vmatpush.msra.mxu0 0.0
        %775 = vmatpush.msra.mxu0 0.0
        %776 = vmatpush.msra.mxu0 0.0
        %777 = vmatpush.msra.mxu0 0.0
        %778 = vmatpush.msra.mxu0 0.0
        %779 = vmatpush.msra.mxu0 0.0
        %780 = vmatpush.msra.mxu0 0.0
        %781 = vmatpush.msra.mxu0 0.0
        %782 = vmatpush.msra.mxu0 0.0
        %783 = vmatpush.msra.mxu0 0.0
        %784 = vmatpush.msra.mxu0 %v764
        %785 = vmatmul.f32.gmra.mxu0 %v767
        %v786 = vpop.f32.mrf.mxu0
        %v787 = vadd.f32 0.0, %v786
        %788 = vdwg.mxu0
        %v790 = vsel %vm509, %v787, 0
        %792 = vmatpush.msra.mxu0 0.0
        %793 = vmatpush.msra.mxu0 0.0
        %794 = vmatpush.msra.mxu0 0.0
        %795 = vmatpush.msra.mxu0 0.0
        %796 = vmatpush.msra.mxu0 0.0
        %797 = vmatpush.msra.mxu0 0.0
        %798 = vmatpush.msra.mxu0 0.0
        %799 = vmatpush.msra.mxu0 0.0
        %800 = vmatpush.msra.mxu0 0.0
        %801 = vmatpush.msra.mxu0 0.0
        %802 = vmatpush.msra.mxu0 0.0
        %803 = vmatpush.msra.mxu0 0.0
        %804 = vmatpush.msra.mxu0 0.0
        %805 = vmatpush.msra.mxu0 0.0
        %806 = vmatpush.msra.mxu0 0.0
        %807 = vmatpush.msra.mxu0 %v507
        %808 = vmatmul.f32.gmra.mxu0 %v790
        %v809 = vpop.f32.mrf.mxu0
        %v810 = vadd.f32 0.0, %v809
        %811 = vdwg.mxu0
        %v812 = vadd.f32 %v708, %v810
        %813 = vrot.lane.b32.xlu0 %v447, 104
        %v814 = vpop.permute.xlu0 %813
        %815 = vrot.lane.b32.xlu0 %v475, 104
        %v816 = vpop.permute.xlu0 %815
        %v817 = vsel %vm509, %v814, 0
        %v819 = vsel %vm509, %v816, 0
        %821 = vmatpush.xpose.msra.mxu0 0.0
        %822 = vmatpush.xpose.msra.mxu0 0.0
        %823 = vmatpush.xpose.msra.mxu0 0.0
        %824 = vmatpush.xpose.msra.mxu0 0.0
        %825 = vmatpush.xpose.msra.mxu0 0.0
        %826 = vmatpush.xpose.msra.mxu0 0.0
        %827 = vmatpush.xpose.msra.mxu0 0.0
        %828 = vmatpush.xpose.msra.mxu0 0.0
        %829 = vmatpush.xpose.msra.mxu0 0.0
        %830 = vmatpush.xpose.msra.mxu0 0.0
        %831 = vmatpush.xpose.msra.mxu0 0.0
        %832 = vmatpush.xpose.msra.mxu0 0.0
        %833 = vmatpush.xpose.msra.mxu0 0.0
        %834 = vmatpush.xpose.msra.mxu0 0.0
        %835 = vmatpush.xpose.msra.mxu0 0.0
        %836 = vmatpush.xpose.msra.mxu0 %v819
        %837 = vmatmul.f32.gmra.mxu0 %v817
        %v838 = vpop.f32.mrf.mxu0
        %v839 = vadd.f32 0.0, %v838
        %840 = vdwg.mxu0
        %v841 = vmul.f32 %v839, 0.35355338
        %v842 = vsel %vm509, %v841, -inf
        %843 = vmax.xlane.f32.xlu0 %v842
        %v844 = vpop.xlane.xlu0 %843
        %v845 = vsub.f32 %v841, %v844
        %v846 = vmul.f32 %v845, 1.442695
        %v847 = vpow.pop %v846
        %v848 = vsel %vm509, %v847, 0.0
        %849 = vadd.xlane.f32.xlu0 %v848
        %v850 = vpop.xlane.xlu0 %849
        %v851 = vrcp.pop %v850
        %v852 = vmul.f32 %v850, %v851
        %v853 = vsub.f32 1.0, %v852
        %v854 = vmul.f32 %v851, %v853
        %v855 = vadd.f32 %v851, %v854
        %vm856 = vweird.f32 %v850
        %vm857 = vweird.f32 %v851
        %vm858 = vmor %vm856, %vm857
        %v859 = vsel %vm858, %v851, %v855
        %v860 = vand.u32 2147483647, %v850
        %vm861 = vcmp.eq.f32.partialorder %v860, 8.507059e+37
        %v862 = vand.u32 %v850, 2147483648
        %v863 = vor.u32 1.1754944e-38, %v862
        %v864 = vsel %vm861, %v863, %v859
        %v865 = vmul.f32 %v847, %v864
        %866 = vrot.lane.b32.xlu0 %v503, 104
        %v867 = vpop.permute.xlu0 %866
        %v870 = vsel %vm509, %v865, 0
        %872 = vmatpush.msra.mxu0 0.0
        %873 = vmatpush.msra.mxu0 0.0
        %874 = vmatpush.msra.mxu0 0.0
        %875 = vmatpush.msra.mxu0 0.0
        %876 = vmatpush.msra.mxu0 0.0
        %877 = vmatpush.msra.mxu0 0.0
        %878 = vmatpush.msra.mxu0 0.0
        %879 = vmatpush.msra.mxu0 0.0
        %880 = vmatpush.msra.mxu0 0.0
        %881 = vmatpush.msra.mxu0 0.0
        %882 = vmatpush.msra.mxu0 0.0
        %883 = vmatpush.msra.mxu0 0.0
        %884 = vmatpush.msra.mxu0 0.0
        %885 = vmatpush.msra.mxu0 0.0
        %886 = vmatpush.msra.mxu0 0.0
        %887 = vmatpush.msra.mxu0 %v867
        %888 = vmatmul.f32.gmra.mxu0 %v870
        %v889 = vpop.f32.mrf.mxu0
        %v890 = vadd.f32 0.0, %v889
        %891 = vdwg.mxu0
        %v893 = vsel %vm509, %v890, 0
        %895 = vmatpush.msra.mxu0 0.0
        %896 = vmatpush.msra.mxu0 0.0
        %897 = vmatpush.msra.mxu0 0.0
        %898 = vmatpush.msra.mxu0 0.0
        %899 = vmatpush.msra.mxu0 0.0
        %900 = vmatpush.msra.mxu0 0.0
        %901 = vmatpush.msra.mxu0 0.0
        %902 = vmatpush.msra.mxu0 0.0
        %903 = vmatpush.msra.mxu0 0.0
        %904 = vmatpush.msra.mxu0 0.0
        %905 = vmatpush.msra.mxu0 0.0
        %906 = vmatpush.msra.mxu0 0.0
        %907 = vmatpush.msra.mxu0 0.0
        %908 = vmatpush.msra.mxu0 0.0
        %909 = vmatpush.msra.mxu0 0.0
        %910 = vmatpush.msra.mxu0 %v508
        %911 = vmatmul.f32.gmra.mxu0 %v893
        %v912 = vpop.f32.mrf.mxu0
        %v913 = vadd.f32 0.0, %v912
        %914 = vdwg.mxu0
        %v915 = vadd.f32 %v812, %v913
        %v916 = vld [vmem:[%s8] sm:$0x1]
        %v918 = vperm.slane %v916, 0
        %v920 = vadd.f32 %v915, %v918
        %921 = vst.msk [vmem:[%s415] sm:$0xff] %vm425, %v920
        %s922 = sand.u32 %s230, 1
        %s923 = scalar_lea.sflag [#allocation4], %s922
        %s924 = sand.u32 %s230, 1
        %s925 = smul.addr %s924, 8
        %s926 = scalar_lea.vmem [#allocation11], %s925
        // Predicated region
        $region77: #{tpu_custom_call.1} parent=55 // pred_check
          %p927 = pneg %p240
        $region78: #{tpu_custom_call.1} parent=55 // pred_check_branch
          %929 = sbr.rel (%p927) target = $region80
        $region79: #{tpu_custom_call.1} parent=55 // pred_region
          %931 = vsyncadd %s923, 0
          %s932 = smul.addr %s28, 8
          %s933 = scalar_lea.hbm %s9, %s932
          %s935 = sshll.u32 %s926, 4
          %s936 = int_to_ptr.vmem [resolvable:$true] %s935
          %s937 = sshll.u32 %s933, 4
          %s938 = int_to_ptr.hbm [resolvable:$true] %s937
          %940 = dma.vmem_to_hbm [thread:$0]  %s936, 128, %s938, %s923
        $region80: #{tpu_custom_call.1} parent=55 // pred_fallthru
          _
      $region56: #{tpu_custom_call.1} parent=5 // pred_fallthru
        _
      %p941 = scmp.le.s32.totalorder 2, %s23
      // Predicated region
      $region81: #{tpu_custom_call.1} parent=5 // pred_check
        %p942 = pneg %p941
      $region82: #{tpu_custom_call.1} parent=5 // pred_check_branch
        %944 = sbr.rel (%p942) target = $region84
      $region83: #{tpu_custom_call.1} parent=5 // pred_region
        %s945 = ssub.s32 %s23, 2
        // Predicated region
        $region85: #{tpu_custom_call.1} parent=83 // pred_check
          %p946 = pneg %p246
        $region86: #{tpu_custom_call.1} parent=83 // pred_check_branch
          %948 = sbr.rel (%p946) target = $region88
        $region87: #{tpu_custom_call.1} parent=83 // pred_region
          %s949 = sand.u32 %s231, 1
          %s950 = scalar_lea.sflag [#allocation4], %s949
          %s951 = sand.u32 %s231, 1
          %s952 = smul.addr %s951, 8
          %s953 = scalar_lea.vmem [#allocation11], %s952
          %955 = dma.done %s950, 128
        $region88: #{tpu_custom_call.1} parent=83 // pred_fallthru
          _
      $region84: #{tpu_custom_call.1} parent=5 // pred_fallthru
        _
    $region6: #{tpu_custom_call.1} parent=1 // loop_footer
      %s27 = sadd.s32 1, %s23
    $region7: #{tpu_custom_call.1} parent=1 // loop_footer_branch
      %22 = sbr.rel target = $region3
    $region8: #{tpu_custom_call.1} parent=1 // loop_exit
      _
    %956 = vsyncpa [#allocation3], 1
    %s957 = scalar_lea.sflag [#allocation3], 1
    %958 = vsyncpa %s957, 1
    %959 = vsyncpa [#allocation6], 1
    %960 = vsyncpa [#allocation9], 1
    %961 = vsyncpa [#allocation4], 1
    %s962 = scalar_lea.sflag [#allocation4], 1
    %963 = vsyncpa %s962, 1

</llo_original>
